<compile_context>
chip_gen: v5e
topology: v5e:2x2
jax: 0.10.0
libtpu: 0.0.40
codegen_flags: <defaults>
</compile_context>

<pallas_src>
import jax
import jax.numpy as jnp
from jax.experimental import pallas as pl
from jax.experimental.pallas import tpu as pltpu


def compute_hidden_dim(dim, hidden_dim, multiple_of, ffn_dim_multiplier):
    hidden_dim = int(2 * hidden_dim / 3)
    if ffn_dim_multiplier is not None:
        hidden_dim = int(ffn_dim_multiplier * hidden_dim)
    return multiple_of * ((hidden_dim + multiple_of - 1) // multiple_of)


def _ffn_kernel(x_ref, w1_ref, w3_ref, w2_ref, o_ref, acc_ref):
    h = pl.program_id(1)

    @pl.when(h == 0)
    def _init():
        acc_ref[...] = jnp.zeros_like(acc_ref)

    # Matmuls in the weight dtype (bf16 -> native MXU path), accumulate in f32.
    x = x_ref[...].astype(w1_ref.dtype)                       # (tm, D)
    h1 = jnp.dot(x, w1_ref[...], preferred_element_type=jnp.float32)  # (tm, th)
    h3 = jnp.dot(x, w3_ref[...], preferred_element_type=jnp.float32)  # (tm, th)
    # SwiGLU elementwise in f32 (VPU; sigmoid on EUP).
    g = h1 * jax.nn.sigmoid(h1) * h3                          # (tm, th) f32
    # Partial down-projection for this hidden slice, accumulated in f32.
    acc_ref[...] += jnp.dot(g.astype(w2_ref.dtype), w2_ref[...],
                            preferred_element_type=jnp.float32)

    @pl.when(h == pl.num_programs(1) - 1)
    def _finalize():
        o_ref[...] = acc_ref[...].astype(o_ref.dtype)


def _pick_tile(total, candidates):
    # Largest candidate that divides `total` AND leaves >= 2 grid steps.
    for c in candidates:
        if total % c == 0 and total // c >= 2:
            return c
    # Otherwise largest candidate that divides `total`.
    for c in candidates:
        if total % c == 0:
            return c
    return total  # full extent (always legal as a block dim)


def feed_forward(x, w1, w3, w2, *, tm=None, th=None, out_dtype=None):
    """x: (batch, seq, dim); w1, w3: (dim, hidden); w2: (hidden, dim)."""
    B, S, D = x.shape
    H = w1.shape[1]
    assert w1.shape == (D, H) and w3.shape == (D, H) and w2.shape == (H, D)
    T = B * S
    x2 = x.reshape(T, D)
    out_dtype = out_dtype or x.dtype

    if tm is None:
        # 256 matches the v6e/v7x MXU; 128 the v5e MXU; fall back for tiny T.
        tm = _pick_tile(T, (256, 128, 64, 32, 16, 8))
    if th is None:
        th = _pick_tile(H, (512, 256, 128))
    assert T % tm == 0 and H % th == 0

    xbytes = jnp.dtype(x.dtype).itemsize
    wbytes = jnp.dtype(w1.dtype).itemsize
    obytes = jnp.dtype(out_dtype).itemsize

    # VMEM budget: double-buffered input/output tiles + f32 accumulator scratch.
    tile_bytes = (
        2 * (tm * D * xbytes          # x tile
             + 2 * D * th * wbytes    # w1, w3 tiles
             + th * D * wbytes        # w2 tile
             + tm * D * obytes)       # output tile
        + tm * D * 4                  # f32 accumulator
    )
    # Leave headroom but never exceed v7x's 64 MiB physical VMEM.
    vmem_limit = int(min(64 * 2**20, max(32 * 2**20, int(1.5 * tile_bytes))))

    cost = pl.CostEstimate(
        flops=6 * T * D * H,                       # three T x D x H matmuls
        transcendentals=T * H,                     # sigmoid in SiLU
        bytes_accessed=int(T * D * xbytes + 3 * D * H * wbytes + T * D * obytes),
    )

    grid = (T // tm, H // th)
    out2 = pl.pallas_call(
        _ffn_kernel,
        out_shape=jax.ShapeDtypeStruct((T, D), out_dtype),
        grid_spec=pltpu.PrefetchScalarGridSpec(
            num_scalar_prefetch=0,
            grid=grid,
            in_specs=[
                pl.BlockSpec((tm, D), lambda i, h: (i, 0)),   # x tile (reused across h)
                pl.BlockSpec((D, th), lambda i, h: (0, h)),   # w1 slice (streamed)
                pl.BlockSpec((D, th), lambda i, h: (0, h)),   # w3 slice (streamed)
                pl.BlockSpec((th, D), lambda i, h: (h, 0)),   # w2 slice (streamed)
            ],
            out_specs=pl.BlockSpec((tm, D), lambda i, h: (i, 0)),
            scratch_shapes=[pltpu.VMEM((tm, D), jnp.float32)],
        ),
        compiler_params=pltpu.CompilerParams(
            dimension_semantics=("parallel", "arbitrary"),
            vmem_limit_bytes=vmem_limit,
        ),
        cost_estimate=cost,
    )(x2, w1, w3, w2)
    return out2.reshape(B, S, D)


if __name__ == "__main__":
    # Small, tile-friendly shapes consistent with the module.
    batch, seq, dim = 2, 8, 128
    multiple_of = 128
    ffn_dim_multiplier = None
    hidden = compute_hidden_dim(dim, 4 * dim, multiple_of, ffn_dim_multiplier)  # 384

    key = jax.random.PRNGKey(0)
    kx, k1, k2, k3 = jax.random.split(key, 4)
    x = jax.random.normal(kx, (batch, seq, dim), dtype=jnp.float32)
    # Weights in bf16 (recommended streaming/compute dtype), stored (in, out).
    w1 = (jax.random.normal(k1, (dim, hidden), dtype=jnp.float32) * 0.02).astype(jnp.bfloat16)
    w3 = (jax.random.normal(k3, (dim, hidden), dtype=jnp.float32) * 0.02).astype(jnp.bfloat16)
    w2 = (jax.random.normal(k2, (hidden, dim), dtype=jnp.float32) * 0.02).astype(jnp.bfloat16)

    out = feed_forward(x, w1, w3, w2)
    jax.block_until_ready(out)
    assert out.shape == (batch, seq, dim)
    assert out.dtype == x.dtype

    # Reference 1: pure-JAX path mimicking the kernel's precision (bf16 matmuls,
    # f32 accumulation and elementwise) -> tight tolerance.
    xb = x.reshape(batch * seq, dim).astype(jnp.bfloat16)
    h1 = jnp.dot(xb, w1, preferred_element_type=jnp.float32)
    h3 = jnp.dot(xb, w3, preferred_element_type=jnp.float32)
    g = h1 * jax.nn.sigmoid(h1) * h3
    ref = jnp.dot(g.astype(jnp.bfloat16), w2, preferred_element_type=jnp.float32)
    ref = ref.reshape(batch, seq, dim).astype(x.dtype)
    assert jnp.allclose(out, ref, atol=1e-3, rtol=1e-2), "mismatch vs bf16-path reference"

    # Reference 2: full-f32 math, loose tolerance (validates SwiGLU semantics).
    w1f, w2f, w3f = w1.astype(jnp.float32), w2.astype(jnp.float32), w3.astype(jnp.float32)
    h1f = x @ w1f
    ref_f32 = (h1f * jax.nn.sigmoid(h1f) * (x @ w3f)) @ w2f
    assert jnp.allclose(out, ref_f32, atol=2e-2, rtol=2e-2), "mismatch vs f32 reference"

    print("KERNEL_OK")
</pallas_src>

<mosaic_0001>
module attributes {stable_mosaic.version = 11 : i64} {
  func.func @_ffn_kernel(%arg0: i32, %arg1: i32, %arg2: memref<8x128xf32, #tpu.memory_space<vmem>>, %arg3: memref<128x128xbf16, #tpu.memory_space<vmem>>, %arg4: memref<128x128xbf16, #tpu.memory_space<vmem>>, %arg5: memref<128x128xbf16, #tpu.memory_space<vmem>>, %arg6: memref<8x128xf32, #tpu.memory_space<vmem>>, %arg7: memref<8x128xf32, #tpu.memory_space<vmem>>) attributes {dimension_semantics = [#tpu.dimension_semantics<parallel>, #tpu.dimension_semantics<arbitrary>], iteration_bounds = array<i64: 2, 3>, scalar_prefetch = 0 : i64, scratch_operands = 1 : i64, tpu.core_type = #tpu.core_type<tc>, window_params = [{transform_indices = @transform_0, window_bounds = array<i64: 8, 128>}, {transform_indices = @transform_1, window_bounds = array<i64: 128, 128>}, {transform_indices = @transform_2, window_bounds = array<i64: 128, 128>}, {transform_indices = @transform_3, window_bounds = array<i64: 128, 128>}, {transform_indices = @transform_4, window_bounds = array<i64: 8, 128>}]} {
    %c0_i32 = arith.constant 0 : i32
    %0 = arith.cmpi eq, %arg1, %c0_i32 : i32
    %1 = arith.extui %0 : i1 to i32
    %c0_i32_0 = arith.constant 0 : i32
    %2 = arith.cmpi ne, %1, %c0_i32_0 : i32
    scf.if %2 {
      %cst_16 = arith.constant 0.000000e+00 : f32
      %25 = vector.broadcast %cst_16 : f32 to vector<8x128xf32>
      %c0_17 = arith.constant 0 : index
      %c0_18 = arith.constant 0 : index
      %26 = vector.load %arg7[%c0_17, %c0_18] : memref<8x128xf32, #tpu.memory_space<vmem>>, vector<8x128xf32>
      tpu.vector_store %arg7[%c0_17, %c0_18], %25 {strides = array<i32>} : memref<8x128xf32, #tpu.memory_space<vmem>>, vector<8x128xf32>,
    } else {
    }
    %c0 = arith.constant 0 : index
    %c0_1 = arith.constant 0 : index
    %3 = vector.load %arg2[%c0, %c0_1] : memref<8x128xf32, #tpu.memory_space<vmem>>, vector<8x128xf32>
    %4 = arith.truncf %3 : vector<8x128xf32> to vector<8x128xbf16>
    %c0_2 = arith.constant 0 : index
    %c0_3 = arith.constant 0 : index
    %5 = vector.load %arg3[%c0_2, %c0_3] : memref<128x128xbf16, #tpu.memory_space<vmem>>, vector<128x128xbf16>
    %cst = arith.constant dense<0.000000e+00> : vector<8x128xf32>
    %6 = tpu.matmul %4, %5, %cst {dimension_numbers = #tpu.dot_dimension_numbers<[1], [0], [0], [1], [0, 0, 1, 1], [], []>} : vector<8x128xbf16>, vector<128x128xbf16>, vector<8x128xf32> -> vector<8x128xf32>
    %c0_4 = arith.constant 0 : index
    %c0_5 = arith.constant 0 : index
    %7 = vector.load %arg4[%c0_4, %c0_5] : memref<128x128xbf16, #tpu.memory_space<vmem>>, vector<128x128xbf16>
    %cst_6 = arith.constant dense<0.000000e+00> : vector<8x128xf32>
    %8 = tpu.matmul %4, %7, %cst_6 {dimension_numbers = #tpu.dot_dimension_numbers<[1], [0], [0], [1], [0, 0, 1, 1], [], []>} : vector<8x128xbf16>, vector<128x128xbf16>, vector<8x128xf32> -> vector<8x128xf32>
    %9 = arith.negf %6 : vector<8x128xf32>
    %10 = math.exp %9 : vector<8x128xf32>
    %cst_7 = arith.constant 1.000000e+00 : f32
    %11 = vector.broadcast %cst_7 : f32 to vector<8x128xf32>
    %12 = arith.addf %11, %10 : vector<8x128xf32>
    %13 = arith.divf %11, %12 : vector<8x128xf32>
    %14 = arith.mulf %6, %13 : vector<8x128xf32>
    %15 = arith.mulf %14, %8 : vector<8x128xf32>
    %c0_8 = arith.constant 0 : index
    %c0_9 = arith.constant 0 : index
    %16 = vector.load %arg7[%c0_8, %c0_9] : memref<8x128xf32, #tpu.memory_space<vmem>>, vector<8x128xf32>
    %17 = arith.truncf %15 : vector<8x128xf32> to vector<8x128xbf16>
    %c0_10 = arith.constant 0 : index
    %c0_11 = arith.constant 0 : index
    %18 = vector.load %arg5[%c0_10, %c0_11] : memref<128x128xbf16, #tpu.memory_space<vmem>>, vector<128x128xbf16>
    %cst_12 = arith.constant dense<0.000000e+00> : vector<8x128xf32>
    %19 = tpu.matmul %17, %18, %cst_12 {dimension_numbers = #tpu.dot_dimension_numbers<[1], [0], [0], [1], [0, 0, 1, 1], [], []>} : vector<8x128xbf16>, vector<128x128xbf16>, vector<8x128xf32> -> vector<8x128xf32>
    %20 = arith.addf %16, %19 : vector<8x128xf32>
    %c0_13 = arith.constant 0 : index
    %c0_14 = arith.constant 0 : index
    %21 = vector.load %arg7[%c0_13, %c0_14] : memref<8x128xf32, #tpu.memory_space<vmem>>, vector<8x128xf32>
    tpu.vector_store %arg7[%c0_13, %c0_14], %20 {strides = array<i32>} : memref<8x128xf32, #tpu.memory_space<vmem>>, vector<8x128xf32>,
    %c2_i32 = arith.constant 2 : i32
    %22 = arith.cmpi eq, %arg1, %c2_i32 : i32
    %23 = arith.extui %22 : i1 to i32
    %c0_i32_15 = arith.constant 0 : i32
    %24 = arith.cmpi ne, %23, %c0_i32_15 : i32
    scf.if %24 {
      %c0_16 = arith.constant 0 : index
      %c0_17 = arith.constant 0 : index
      %25 = vector.load %arg7[%c0_16, %c0_17] : memref<8x128xf32, #tpu.memory_space<vmem>>, vector<8x128xf32>
      %c0_18 = arith.constant 0 : index
      %c0_19 = arith.constant 0 : index
      %26 = vector.load %arg6[%c0_18, %c0_19] : memref<8x128xf32, #tpu.memory_space<vmem>>, vector<8x128xf32>
      tpu.vector_store %arg6[%c0_18, %c0_19], %25 {strides = array<i32>} : memref<8x128xf32, #tpu.memory_space<vmem>>, vector<8x128xf32>,
    } else {
    }
    return
  }
  func.func @transform_0(%arg0: i32, %arg1: i32) -> (i32, i32) {
    %c0_i32 = arith.constant 0 : i32
    %c0_i32_0 = arith.constant 0 : i32
    return %arg0, %c0_i32 : i32, i32
  }
  func.func @transform_1(%arg0: i32, %arg1: i32) -> (i32, i32) {
    %c0_i32 = arith.constant 0 : i32
    %c0_i32_0 = arith.constant 0 : i32
    return %c0_i32, %arg1 : i32, i32
  }
  func.func @transform_2(%arg0: i32, %arg1: i32) -> (i32, i32) {
    %c0_i32 = arith.constant 0 : i32
    %c0_i32_0 = arith.constant 0 : i32
    return %c0_i32, %arg1 : i32, i32
  }
  func.func @transform_3(%arg0: i32, %arg1: i32) -> (i32, i32) {
    %c0_i32 = arith.constant 0 : i32
    %c0_i32_0 = arith.constant 0 : i32
    return %arg1, %c0_i32 : i32, i32
  }
  func.func @transform_4(%arg0: i32, %arg1: i32) -> (i32, i32) {
    %c0_i32 = arith.constant 0 : i32
    %c0_i32_0 = arith.constant 0 : i32
    return %arg0, %c0_i32 : i32, i32
  }
}

</mosaic_0001>

<llo_original>
// kernel: tpu_custom_call.1
$region0: #{tpu_custom_call.1}
  #allocation0 [shape = 'u32[]', space=smem, size = 0x4, offset = 0x4, fixed_abs, tag = 'smem constant byte address 0x4 - core index']
  #allocation1 [shape = 'u32[72,128]{1,0:T(1,128)}', space=vmem, size = 0x9000, scoped, tag = 'internal scratch']
  #allocation2 [shape = 'f32[8,128]{1,0:T(8,128)}', space=vmem, size = 0x1000, scoped, tag = 'scratch operand']
  %s0 = inlined_call_operand.hbm [shape: f32[16,128], index: 0, kind: input, shape index: {}]
  %s1 = inlined_call_operand.hbm [shape: bf16[128,384], index: 1, kind: input, shape index: {}]
  %s2 = inlined_call_operand.hbm [shape: bf16[128,384], index: 2, kind: input, shape index: {}]
  %s3 = inlined_call_operand.hbm [shape: bf16[384,128], index: 3, kind: input, shape index: {}]
  %s4 = inlined_call_operand.hbm [shape: f32[16,128], index: 4, kind: output, shape index: {}]
  %s5 = sld [smem:[#allocation0]]
  $region73: #{tpu_custom_call.1} parent=0
    _
  %s7 = ssub.s32 1, %s5
  %s8 = scalar_select 0, %s7, %s5
  $region1: #{tpu_custom_call.1} parent=0
    #allocation3 [shape = 'u8[8192]{0}', space=vmem, size = 0x2000, scoped, tag = 'input window, operand 0']
    #allocation4 [shape = 's32[2]{0}', space=sflag, size = 0x8, scoped, tag = 'scoped memory for tpu_custom_call.1']
    #allocation5 [shape = 's32[2]{0}', space=sflag, size = 0x8, scoped, tag = 'scoped memory for tpu_custom_call.1']
    #allocation6 [shape = 'u8[65536]{0}', space=vmem, size = 0x10000, scoped, tag = 'input window, operand 1']
    #allocation7 [shape = 's32[2]{0}', space=sflag, size = 0x8, scoped, tag = 'scoped memory for tpu_custom_call.1']
    #allocation8 [shape = 'u8[65536]{0}', space=vmem, size = 0x10000, scoped, tag = 'input window, operand 2']
    #allocation9 [shape = 'u8[65536]{0}', space=vmem, size = 0x10000, scoped, tag = 'input window, operand 3']
    #allocation10 [shape = 's32[2]{0}', space=sflag, size = 0x8, scoped, tag = 'scoped memory for tpu_custom_call.1']
    #allocation11 [shape = 'u8[8192]{0}', space=vmem, size = 0x2000, scoped, tag = 'output window, operand 0']
    %9 = vsyncpa [#allocation4], 0
    %s10 = scalar_lea.sflag [#allocation4], 1
    %11 = vsyncpa %s10, 0
    %12 = vsyncpa [#allocation7], 0
    %s13 = scalar_lea.sflag [#allocation7], 1
    %14 = vsyncpa %s13, 0
    %15 = vsyncpa [#allocation10], 0
    %s16 = scalar_lea.sflag [#allocation10], 1
    %17 = vsyncpa %s16, 0
    %18 = vsyncpa [#allocation5], 0
    %s19 = scalar_lea.sflag [#allocation5], 1
    %20 = vsyncpa %s19, 0
    loop: start=0, step=1, limit=8
    $region2: #{tpu_custom_call.1} parent=1 // loop_pre_header
      _
    $region3: #{tpu_custom_call.1} parent=1 // loop_header
      %s22 = sphi 0, %s26
      %p23 = scmp.ge.s32.totalorder %s22, 8
      %s29 = sphi 0, %s41
      %s30 = sphi 0, %s37
      %s31 = sphi 0, %s29
      %s32 = sphi 0, %s30
      %s33 = sphi 0, %s31
      %s34 = sphi 0, %s32
      %s44 = sphi 0, %s46
      %s47 = sphi 0, %s44
      %s48 = sphi 0, %s47
      %s64 = sphi 0, %s48
      %s70 = sphi 0, %s72
      %s73 = sphi 0, %s70
      %s74 = sphi 0, %s73
      %s90 = sphi 0, %s74
      %s96 = sphi 0, %s98
      %s99 = sphi 0, %s96
      %s100 = sphi 0, %s99
      %s116 = sphi 0, %s100
      %s122 = sphi 0, %s124
      %s125 = sphi 0, %s122
      %s126 = sphi 0, %s125
      %s142 = sphi 0, %s126
      %s148 = sphi 0, %s150
      %s151 = sphi 0, %s148
      %s152 = sphi 0, %s151
      %s168 = sphi 0, %s152
    $region4: #{tpu_custom_call.1} parent=1 // loop_header_branch
      %25 = sbr.rel (%p23) target = $region8
    $region5: #{tpu_custom_call.1} parent=1 // loop_body
      %s27 = ssub.s32 %s22, 1
      %s28 = ssub.s32 %s22, 2
      %s35 = sadd.s32 1, %s30
      %p36 = scmp.ge.s32.totalorder %s35, 3
      %s37 = scalar_select %p36, 0, %s35
      %s38 = sadd.s32 1, %s29
      %s39 = scalar_select %p36, %s38, %s29
      %p40 = scmp.ge.s32.totalorder %s39, 2
      %s41 = scalar_select %p40, 0, %s39
      %s42 = ssub.s32 %s29, %s41
      %p43 = scmp.eq.s32.totalorder %s42, 0
      %s45 = sadd.s32 %s44, 1
      %s46 = scalar_select %p43, %s44, %s45
      %p49 = pneg %p43
      %p50 = scmp.eq.s32.totalorder %s22, 5
      %p51 = por %p49, %p50
      %p52 = scmp.ne.s32.totalorder %s44, %s47
      %p53 = scmp.eq.s32.totalorder %s22, 0
      %p54 = por %p52, %p53
      %p55 = scmp.ne.s32.totalorder %s44, %s47
      %p56 = scmp.eq.s32.totalorder %s27, 5
      %p57 = por %p55, %p56
      %p58 = scmp.ne.s32.totalorder %s47, %s48
      %p59 = scmp.eq.s32.totalorder %s27, 0
      %p60 = por %p58, %p59
      %p61 = scmp.ne.s32.totalorder %s47, %s48
      %p62 = scmp.eq.s32.totalorder %s28, 5
      %p63 = por %p61, %p62
      %p65 = scmp.ne.s32.totalorder %s48, %s64
      %p66 = scmp.eq.s32.totalorder %s28, 0
      %p67 = por %p65, %p66
      %s68 = ssub.s32 %s30, %s37
      %p69 = scmp.eq.s32.totalorder %s68, 0
      %s71 = sadd.s32 %s70, 1
      %s72 = scalar_select %p69, %s70, %s71
      %p75 = pneg %p69
      %p76 = scmp.eq.s32.totalorder %s22, 5
      %p77 = por %p75, %p76
      %p78 = scmp.ne.s32.totalorder %s70, %s73
      %p79 = scmp.eq.s32.totalorder %s22, 0
      %p80 = por %p78, %p79
      %p81 = scmp.ne.s32.totalorder %s70, %s73
      %p82 = scmp.eq.s32.totalorder %s27, 5
      %p83 = por %p81, %p82
      %p84 = scmp.ne.s32.totalorder %s73, %s74
      %p85 = scmp.eq.s32.totalorder %s27, 0
      %p86 = por %p84, %p85
      %p87 = scmp.ne.s32.totalorder %s73, %s74
      %p88 = scmp.eq.s32.totalorder %s28, 5
      %p89 = por %p87, %p88
      %p91 = scmp.ne.s32.totalorder %s74, %s90
      %p92 = scmp.eq.s32.totalorder %s28, 0
      %p93 = por %p91, %p92
      %s94 = ssub.s32 %s30, %s37
      %p95 = scmp.eq.s32.totalorder %s94, 0
      %s97 = sadd.s32 %s96, 1
      %s98 = scalar_select %p95, %s96, %s97
      %p101 = pneg %p95
      %p102 = scmp.eq.s32.totalorder %s22, 5
      %p103 = por %p101, %p102
      %p104 = scmp.ne.s32.totalorder %s96, %s99
      %p105 = scmp.eq.s32.totalorder %s22, 0
      %p106 = por %p104, %p105
      %p107 = scmp.ne.s32.totalorder %s96, %s99
      %p108 = scmp.eq.s32.totalorder %s27, 5
      %p109 = por %p107, %p108
      %p110 = scmp.ne.s32.totalorder %s99, %s100
      %p111 = scmp.eq.s32.totalorder %s27, 0
      %p112 = por %p110, %p111
      %p113 = scmp.ne.s32.totalorder %s99, %s100
      %p114 = scmp.eq.s32.totalorder %s28, 5
      %p115 = por %p113, %p114
      %p117 = scmp.ne.s32.totalorder %s100, %s116
      %p118 = scmp.eq.s32.totalorder %s28, 0
      %p119 = por %p117, %p118
      %s120 = ssub.s32 %s30, %s37
      %p121 = scmp.eq.s32.totalorder %s120, 0
      %s123 = sadd.s32 %s122, 1
      %s124 = scalar_select %p121, %s122, %s123
      %p127 = pneg %p121
      %p128 = scmp.eq.s32.totalorder %s22, 5
      %p129 = por %p127, %p128
      %p130 = scmp.ne.s32.totalorder %s122, %s125
      %p131 = scmp.eq.s32.totalorder %s22, 0
      %p132 = por %p130, %p131
      %p133 = scmp.ne.s32.totalorder %s122, %s125
      %p134 = scmp.eq.s32.totalorder %s27, 5
      %p135 = por %p133, %p134
      %p136 = scmp.ne.s32.totalorder %s125, %s126
      %p137 = scmp.eq.s32.totalorder %s27, 0
      %p138 = por %p136, %p137
      %p139 = scmp.ne.s32.totalorder %s125, %s126
      %p140 = scmp.eq.s32.totalorder %s28, 5
      %p141 = por %p139, %p140
      %p143 = scmp.ne.s32.totalorder %s126, %s142
      %p144 = scmp.eq.s32.totalorder %s28, 0
      %p145 = por %p143, %p144
      %s146 = ssub.s32 %s29, %s41
      %p147 = scmp.eq.s32.totalorder %s146, 0
      %s149 = sadd.s32 %s148, 1
      %s150 = scalar_select %p147, %s148, %s149
      %p153 = pneg %p147
      %p154 = scmp.eq.s32.totalorder %s22, 5
      %p155 = por %p153, %p154
      %p156 = scmp.ne.s32.totalorder %s148, %s151
      %p157 = scmp.eq.s32.totalorder %s22, 0
      %p158 = por %p156, %p157
      %p159 = scmp.ne.s32.totalorder %s148, %s151
      %p160 = scmp.eq.s32.totalorder %s27, 5
      %p161 = por %p159, %p160
      %p162 = scmp.ne.s32.totalorder %s151, %s152
      %p163 = scmp.eq.s32.totalorder %s27, 0
      %p164 = por %p162, %p163
      %p165 = scmp.ne.s32.totalorder %s151, %s152
      %p166 = scmp.eq.s32.totalorder %s28, 5
      %p167 = por %p165, %p166
      %p169 = scmp.ne.s32.totalorder %s152, %s168
      %p170 = scmp.eq.s32.totalorder %s28, 0
      %p171 = por %p169, %p170
      %p172 = scmp.le.s32.totalorder 1, %s22
      %p173 = scmp.lt.s32.totalorder %s22, 7
      %p174 = pnand %p172, %p173
      %p175 = pneg %p174
      // Predicated region
      $region9: #{tpu_custom_call.1} parent=5 // pred_check
        _
      $region10: #{tpu_custom_call.1} parent=5 // pred_check_branch
        %177 = sbr.rel (%p174) target = $region12
      $region11: #{tpu_custom_call.1} parent=5 // pred_region
        %s178 = ssub.s32 %s22, 1
      $region12: #{tpu_custom_call.1} parent=5 // pred_fallthru
        _
      %p179 = scmp.lt.s32.totalorder %s22, 6
      // Predicated region
      $region13: #{tpu_custom_call.1} parent=5 // pred_check
        %p180 = pneg %p179
      $region14: #{tpu_custom_call.1} parent=5 // pred_check_branch
        %182 = sbr.rel (%p180) target = $region16
      $region15: #{tpu_custom_call.1} parent=5 // pred_region
        // Predicated region
        $region17: #{tpu_custom_call.1} parent=15 // pred_check
          %p183 = pneg %p54
        $region18: #{tpu_custom_call.1} parent=15 // pred_check_branch
          %185 = sbr.rel (%p183) target = $region20
        $region19: #{tpu_custom_call.1} parent=15 // pred_region
          %s186 = sand.u32 %s44, 1
          %s187 = scalar_lea.sflag [#allocation4], %s186
          %s188 = sand.u32 %s44, 1
          %s189 = smul.addr %s188, 8
          %s190 = scalar_lea.vmem [#allocation3], %s189
          %192 = vsyncadd %s187, 0
          %s193 = smul.addr %s29, 8
          %s194 = scalar_lea.hbm %s0, %s193
          %s196 = sshll.u32 %s194, 4
          %s197 = int_to_ptr.hbm [resolvable:$true] %s196
          %s198 = sshll.u32 %s190, 4
          %s199 = int_to_ptr.vmem [resolvable:$true] %s198
          %201 = dma.hbm_to_vmem [thread:$0]  %s197, 128, %s199, %s187
        $region20: #{tpu_custom_call.1} parent=15 // pred_fallthru
          _
        // Predicated region
        $region21: #{tpu_custom_call.1} parent=15 // pred_check
          %p202 = pneg %p80
        $region22: #{tpu_custom_call.1} parent=15 // pred_check_branch
          %204 = sbr.rel (%p202) target = $region24
        $region23: #{tpu_custom_call.1} parent=15 // pred_region
          %s205 = sand.u32 %s22, 1
          %s206 = scalar_lea.sflag [#allocation7], %s205
          %s207 = sand.u32 %s70, 1
          %s208 = smul.addr %s207, 64
          %s209 = scalar_lea.vmem [#allocation6], %s208
          %211 = vsyncadd %s206, 0
          %s212 = smul.addr %s30, 4
          %s213 = scalar_lea.hbm %s1, %s212
          %s214 = sshll.u32 %s213, 4
          %s215 = int_to_ptr.hbm [resolvable:$true] %s214
          %s216 = sshll.u32 %s209, 4
          %s217 = int_to_ptr.vmem [resolvable:$true] %s216
          %222 = dma.hbm_to_vmem [thread:$0]  %s215, 1024, %s217, %s206, 192, 64, 4
        $region24: #{tpu_custom_call.1} parent=15 // pred_fallthru
          _
        // Predicated region
        $region25: #{tpu_custom_call.1} parent=15 // pred_check
          %p223 = pneg %p106
        $region26: #{tpu_custom_call.1} parent=15 // pred_check_branch
          %225 = sbr.rel (%p223) target = $region28
        $region27: #{tpu_custom_call.1} parent=15 // pred_region
          %s226 = sand.u32 %s22, 1
          %s227 = scalar_lea.sflag [#allocation7], %s226
          %s228 = sand.u32 %s96, 1
          %s229 = smul.addr %s228, 64
          %s230 = scalar_lea.vmem [#allocation8], %s229
          %232 = vsyncadd %s227, 0
          %s233 = smul.addr %s30, 4
          %s234 = scalar_lea.hbm %s2, %s233
          %s235 = sshll.u32 %s234, 4
          %s236 = int_to_ptr.hbm [resolvable:$true] %s235
          %s237 = sshll.u32 %s230, 4
          %s238 = int_to_ptr.vmem [resolvable:$true] %s237
          %243 = dma.hbm_to_vmem [thread:$0]  %s236, 1024, %s238, %s227, 192, 64, 4
        $region28: #{tpu_custom_call.1} parent=15 // pred_fallthru
          _
        // Predicated region
        $region29: #{tpu_custom_call.1} parent=15 // pred_check
          %p244 = pneg %p132
        $region30: #{tpu_custom_call.1} parent=15 // pred_check_branch
          %246 = sbr.rel (%p244) target = $region32
        $region31: #{tpu_custom_call.1} parent=15 // pred_region
          %s247 = sand.u32 %s122, 1
          %s248 = scalar_lea.sflag [#allocation10], %s247
          %s249 = sand.u32 %s122, 1
          %s250 = smul.addr %s249, 64
          %s251 = scalar_lea.vmem [#allocation9], %s250
          %s252 = smul.u32 16, %s30
          %254 = vsyncadd %s248, 0
          %s255 = smul.addr %s252, 4
          %s256 = scalar_lea.hbm %s3, %s255
          %s257 = sshll.u32 %s256, 4
          %s258 = int_to_ptr.hbm [resolvable:$true] %s257
          %s259 = sshll.u32 %s251, 4
          %s260 = int_to_ptr.vmem [resolvable:$true] %s259
          %265 = dma.hbm_to_vmem [thread:$0]  %s258, 1024, %s260, %s248, 64, 64, 4
        $region32: #{tpu_custom_call.1} parent=15 // pred_fallthru
          _
      $region16: #{tpu_custom_call.1} parent=5 // pred_fallthru
        _
      %p266 = scmp.le.s32.totalorder 1, %s22
      %p267 = scmp.lt.s32.totalorder %s22, 7
      %p268 = pnand %p266, %p267
      %p269 = pneg %p268
      // Predicated region
      $region33: #{tpu_custom_call.1} parent=5 // pred_check
        _
      $region34: #{tpu_custom_call.1} parent=5 // pred_check_branch
        %271 = sbr.rel (%p268) target = $region36
      $region35: #{tpu_custom_call.1} parent=5 // pred_region
        %s272 = ssub.s32 %s22, 1
        %s273 = sand.u32 %s47, 1
        %s274 = scalar_lea.sflag [#allocation4], %s273
        %s275 = sand.u32 %s47, 1
        %s276 = smul.addr %s275, 8
        %s277 = scalar_lea.vmem [#allocation3], %s276
        // Predicated region
        $region37: #{tpu_custom_call.1} parent=35 // pred_check
          %p278 = pneg %p60
        $region38: #{tpu_custom_call.1} parent=35 // pred_check_branch
          %280 = sbr.rel (%p278) target = $region40
        $region39: #{tpu_custom_call.1} parent=35 // pred_region
          %282 = dma.done %s274, 128
        $region40: #{tpu_custom_call.1} parent=35 // pred_fallthru
          _
        %s283 = sand.u32 %s27, 1
        %s284 = scalar_lea.sflag [#allocation7], %s283
        %s285 = sand.u32 %s73, 1
        %s286 = smul.addr %s285, 64
        %s287 = scalar_lea.vmem [#allocation6], %s286
        // Predicated region
        $region41: #{tpu_custom_call.1} parent=35 // pred_check
          %p288 = pneg %p86
        $region42: #{tpu_custom_call.1} parent=35 // pred_check_branch
          %290 = sbr.rel (%p288) target = $region44
        $region43: #{tpu_custom_call.1} parent=35 // pred_region
          %292 = dma.done %s284, 1024
        $region44: #{tpu_custom_call.1} parent=35 // pred_fallthru
          _
        %s293 = sand.u32 %s27, 1
        %s294 = scalar_lea.sflag [#allocation7], %s293
        %s295 = sand.u32 %s99, 1
        %s296 = smul.addr %s295, 64
        %s297 = scalar_lea.vmem [#allocation8], %s296
        // Predicated region
        $region45: #{tpu_custom_call.1} parent=35 // pred_check
          %p298 = pneg %p112
        $region46: #{tpu_custom_call.1} parent=35 // pred_check_branch
          %300 = sbr.rel (%p298) target = $region48
        $region47: #{tpu_custom_call.1} parent=35 // pred_region
          %302 = dma.done %s294, 1024
        $region48: #{tpu_custom_call.1} parent=35 // pred_fallthru
          _
        %s303 = sand.u32 %s125, 1
        %s304 = scalar_lea.sflag [#allocation10], %s303
        %s305 = sand.u32 %s125, 1
        %s306 = smul.addr %s305, 64
        %s307 = scalar_lea.vmem [#allocation9], %s306
        // Predicated region
        $region49: #{tpu_custom_call.1} parent=35 // pred_check
          %p308 = pneg %p138
        $region50: #{tpu_custom_call.1} parent=35 // pred_check_branch
          %310 = sbr.rel (%p308) target = $region52
        $region51: #{tpu_custom_call.1} parent=35 // pred_region
          %312 = dma.done %s304, 1024
        $region52: #{tpu_custom_call.1} parent=35 // pred_fallthru
          _
        %s313 = sand.u32 %s47, 1
        %s314 = scalar_lea.sflag [#allocation4], %s313
        %s315 = sand.u32 %s47, 1
        %s316 = smul.addr %s315, 8
        %s317 = scalar_lea.vmem [#allocation3], %s316
        %p318 = pneg %p60
        %p319 = pneg %p57
        %s320 = sand.u32 %s27, 1
        %s321 = scalar_lea.sflag [#allocation7], %s320
        %s322 = sand.u32 %s73, 1
        %s323 = smul.addr %s322, 64
        %s324 = scalar_lea.vmem [#allocation6], %s323
        %p325 = pneg %p86
        %p326 = pneg %p83
        %s327 = sand.u32 %s27, 1
        %s328 = scalar_lea.sflag [#allocation7], %s327
        %s329 = sand.u32 %s99, 1
        %s330 = smul.addr %s329, 64
        %s331 = scalar_lea.vmem [#allocation8], %s330
        %p332 = pneg %p112
        %p333 = pneg %p109
        %s334 = sand.u32 %s125, 1
        %s335 = scalar_lea.sflag [#allocation10], %s334
        %s336 = sand.u32 %s125, 1
        %s337 = smul.addr %s336, 64
        %s338 = scalar_lea.vmem [#allocation9], %s337
        %p339 = pneg %p138
        %p340 = pneg %p135
        %p341 = pneg %p164
        %p342 = pneg %p161
        %s343 = sand.u32 %s151, 1
        %s344 = scalar_lea.sflag [#allocation5], %s343
        %s345 = sand.u32 %s151, 1
        %s346 = smul.addr %s345, 8
        %s347 = scalar_lea.vmem [#allocation11], %s346
        %s348 = smul.u32 16, %s32
        %p349 = scmp.eq.s32.totalorder %s32, 0
        // Predicated region
        $region53: #{tpu_custom_call.1} parent=35 // pred_check
          %p350 = pneg %p349
        $region54: #{tpu_custom_call.1} parent=35 // pred_check_branch
          %352 = sbr.rel (%p350) target = $region56
        $region55: #{tpu_custom_call.1} parent=35 // pred_region
          %353 = vst [vmem:[#allocation2] sm:$0xff] 0.0
        $region56: #{tpu_custom_call.1} parent=35 // pred_fallthru
          _
        %v354 = vld [vmem:[%s277] sm:$0xff]
        %v355 = vpack.c.bf16 %v354, %v354
        %v356 = vld [vmem:[%s287] sm:$0xf]
        %v357 = vld [vmem:[%s287 + $0x4] sm:$0xf]
        %v358 = vld [vmem:[%s287 + $0x8] sm:$0xf]
        %v359 = vld [vmem:[%s287 + $0xc] sm:$0xf]
        %v360 = vld [vmem:[%s287 + $0x10] sm:$0xf]
        %v361 = vld [vmem:[%s287 + $0x14] sm:$0xf]
        %v362 = vld [vmem:[%s287 + $0x18] sm:$0xf]
        %v363 = vld [vmem:[%s287 + $0x1c] sm:$0xf]
        %v364 = vld [vmem:[%s287 + $0x20] sm:$0xf]
        %v365 = vld [vmem:[%s287 + $0x24] sm:$0xf]
        %v366 = vld [vmem:[%s287 + $0x28] sm:$0xf]
        %v367 = vld [vmem:[%s287 + $0x2c] sm:$0xf]
        %v368 = vld [vmem:[%s287 + $0x30] sm:$0xf]
        %v369 = vld [vmem:[%s287 + $0x34] sm:$0xf]
        %v370 = vld [vmem:[%s287 + $0x38] sm:$0xf]
        %v371 = vld [vmem:[%s287 + $0x3c] sm:$0xf]
        %v388 = vunpack.c.l.b16 %v356
        %v389 = vunpack.c.l.b16 %v357
        %v390 = vunpack.c.l.b16 %v358
        %v391 = vunpack.c.l.b16 %v359
        %v392 = vunpack.c.l.b16 %v360
        %v393 = vunpack.c.l.b16 %v361
        %v394 = vunpack.c.l.b16 %v362
        %v395 = vunpack.c.l.b16 %v363
        %v396 = vunpack.c.l.b16 %v364
        %v397 = vunpack.c.l.b16 %v365
        %v398 = vunpack.c.l.b16 %v366
        %v399 = vunpack.c.l.b16 %v367
        %v400 = vunpack.c.l.b16 %v368
        %v401 = vunpack.c.l.b16 %v369
        %v402 = vunpack.c.l.b16 %v370
        %v403 = vunpack.c.l.b16 %v371
        %v404 = vpack.c.b16 %v389, %v388
        %v405 = vpack.c.b16 %v391, %v390
        %v406 = vpack.c.b16 %v393, %v392
        %v407 = vpack.c.b16 %v395, %v394
        %v408 = vpack.c.b16 %v397, %v396
        %v409 = vpack.c.b16 %v399, %v398
        %v410 = vpack.c.b16 %v401, %v400
        %v411 = vpack.c.b16 %v403, %v402
        %420 = vmatpush.bf16.msra.mxu0 %v411
        %421 = vmatpush.bf16.msra.mxu0 %v410
        %422 = vmatpush.bf16.msra.mxu0 %v409
        %423 = vmatpush.bf16.msra.mxu0 %v408
        %424 = vmatpush.bf16.msra.mxu0 %v407
        %425 = vmatpush.bf16.msra.mxu0 %v406
        %426 = vmatpush.bf16.msra.mxu0 %v405
        %427 = vmatpush.bf16.msra.mxu0 %v404
        %428 = vmatmul.bf16.gmra.mxu0 %v355
        %v429 = vpop.f32.mrf.mxu0
        %v430 = vadd.f32 0.0, %v429
        %v431 = vpop.f32.mrf.mxu0
        %432 = vdwg.mxu0
        %v433 = vld [vmem:[%s297] sm:$0xf]
        %v434 = vld [vmem:[%s297 + $0x4] sm:$0xf]
        %v435 = vld [vmem:[%s297 + $0x8] sm:$0xf]
        %v436 = vld [vmem:[%s297 + $0xc] sm:$0xf]
        %v437 = vld [vmem:[%s297 + $0x10] sm:$0xf]
        %v438 = vld [vmem:[%s297 + $0x14] sm:$0xf]
        %v439 = vld [vmem:[%s297 + $0x18] sm:$0xf]
        %v440 = vld [vmem:[%s297 + $0x1c] sm:$0xf]
        %v441 = vld [vmem:[%s297 + $0x20] sm:$0xf]
        %v442 = vld [vmem:[%s297 + $0x24] sm:$0xf]
        %v443 = vld [vmem:[%s297 + $0x28] sm:$0xf]
        %v444 = vld [vmem:[%s297 + $0x2c] sm:$0xf]
        %v445 = vld [vmem:[%s297 + $0x30] sm:$0xf]
        %v446 = vld [vmem:[%s297 + $0x34] sm:$0xf]
        %v447 = vld [vmem:[%s297 + $0x38] sm:$0xf]
        %v448 = vld [vmem:[%s297 + $0x3c] sm:$0xf]
        %v465 = vunpack.c.l.b16 %v433
        %v466 = vunpack.c.l.b16 %v434
        %v467 = vunpack.c.l.b16 %v435
        %v468 = vunpack.c.l.b16 %v436
        %v469 = vunpack.c.l.b16 %v437
        %v470 = vunpack.c.l.b16 %v438
        %v471 = vunpack.c.l.b16 %v439
        %v472 = vunpack.c.l.b16 %v440
        %v473 = vunpack.c.l.b16 %v441
        %v474 = vunpack.c.l.b16 %v442
        %v475 = vunpack.c.l.b16 %v443
        %v476 = vunpack.c.l.b16 %v444
        %v477 = vunpack.c.l.b16 %v445
        %v478 = vunpack.c.l.b16 %v446
        %v479 = vunpack.c.l.b16 %v447
        %v480 = vunpack.c.l.b16 %v448
        %v481 = vpack.c.b16 %v466, %v465
        %v482 = vpack.c.b16 %v468, %v467
        %v483 = vpack.c.b16 %v470, %v469
        %v484 = vpack.c.b16 %v472, %v471
        %v485 = vpack.c.b16 %v474, %v473
        %v486 = vpack.c.b16 %v476, %v475
        %v487 = vpack.c.b16 %v478, %v477
        %v488 = vpack.c.b16 %v480, %v479
        %497 = vmatpush.bf16.msra.mxu0 %v488
        %498 = vmatpush.bf16.msra.mxu0 %v487
        %499 = vmatpush.bf16.msra.mxu0 %v486
        %500 = vmatpush.bf16.msra.mxu0 %v485
        %501 = vmatpush.bf16.msra.mxu0 %v484
        %502 = vmatpush.bf16.msra.mxu0 %v483
        %503 = vmatpush.bf16.msra.mxu0 %v482
        %504 = vmatpush.bf16.msra.mxu0 %v481
        %505 = vmatmul.bf16.gmra.mxu0 %v355
        %v506 = vpop.f32.mrf.mxu0
        %v507 = vadd.f32 0.0, %v506
        %v508 = vpop.f32.mrf.mxu0
        %509 = vdwg.mxu0
        %v510 = vxor.u32 %v430, 2147483648
        %v511 = vmul.f32 %v510, 1.442695
        %v512 = vpow.pop %v511
        %v513 = vadd.f32 %v512, 1.0
        %v514 = vrcp.pop %v513
        %v515 = vmul.f32 %v513, %v514
        %v516 = vsub.f32 1.0, %v515
        %v517 = vmul.f32 %v514, %v516
        %v518 = vadd.f32 %v514, %v517
        %vm519 = vweird.f32 %v513
        %vm520 = vweird.f32 %v514
        %vm521 = vmor %vm519, %vm520
        %v522 = vsel %vm521, %v514, %v518
        %v523 = vand.u32 2147483647, %v513
        %vm524 = vcmp.eq.f32.partialorder %v523, 8.507059e+37
        %v525 = vand.u32 %v513, 2147483648
        %v526 = vor.u32 1.1754944e-38, %v525
        %v527 = vsel %vm524, %v526, %v522
        %v528 = vmul.f32 1.0, %v527
        %v529 = vmul.f32 %v430, %v528
        %v530 = vmul.f32 %v529, %v507
        %v531 = vld [vmem:[#allocation2] sm:$0xff]
        %v532 = vpack.c.bf16 %v530, %v530
        %v533 = vld [vmem:[%s307] sm:$0xf]
        %v534 = vld [vmem:[%s307 + $0x4] sm:$0xf]
        %v535 = vld [vmem:[%s307 + $0x8] sm:$0xf]
        %v536 = vld [vmem:[%s307 + $0xc] sm:$0xf]
        %v537 = vld [vmem:[%s307 + $0x10] sm:$0xf]
        %v538 = vld [vmem:[%s307 + $0x14] sm:$0xf]
        %v539 = vld [vmem:[%s307 + $0x18] sm:$0xf]
        %v540 = vld [vmem:[%s307 + $0x1c] sm:$0xf]
        %v541 = vld [vmem:[%s307 + $0x20] sm:$0xf]
        %v542 = vld [vmem:[%s307 + $0x24] sm:$0xf]
        %v543 = vld [vmem:[%s307 + $0x28] sm:$0xf]
        %v544 = vld [vmem:[%s307 + $0x2c] sm:$0xf]
        %v545 = vld [vmem:[%s307 + $0x30] sm:$0xf]
        %v546 = vld [vmem:[%s307 + $0x34] sm:$0xf]
        %v547 = vld [vmem:[%s307 + $0x38] sm:$0xf]
        %v548 = vld [vmem:[%s307 + $0x3c] sm:$0xf]
        %v565 = vunpack.c.l.b16 %v533
        %v566 = vunpack.c.l.b16 %v534
        %v567 = vunpack.c.l.b16 %v535
        %v568 = vunpack.c.l.b16 %v536
        %v569 = vunpack.c.l.b16 %v537
        %v570 = vunpack.c.l.b16 %v538
        %v571 = vunpack.c.l.b16 %v539
        %v572 = vunpack.c.l.b16 %v540
        %v573 = vunpack.c.l.b16 %v541
        %v574 = vunpack.c.l.b16 %v542
        %v575 = vunpack.c.l.b16 %v543
        %v576 = vunpack.c.l.b16 %v544
        %v577 = vunpack.c.l.b16 %v545
        %v578 = vunpack.c.l.b16 %v546
        %v579 = vunpack.c.l.b16 %v547
        %v580 = vunpack.c.l.b16 %v548
        %v581 = vpack.c.b16 %v566, %v565
        %v582 = vpack.c.b16 %v568, %v567
        %v583 = vpack.c.b16 %v570, %v569
        %v584 = vpack.c.b16 %v572, %v571
        %v585 = vpack.c.b16 %v574, %v573
        %v586 = vpack.c.b16 %v576, %v575
        %v587 = vpack.c.b16 %v578, %v577
        %v588 = vpack.c.b16 %v580, %v579
        %597 = vmatpush.bf16.msra.mxu0 %v588
        %598 = vmatpush.bf16.msra.mxu0 %v587
        %599 = vmatpush.bf16.msra.mxu0 %v586
        %600 = vmatpush.bf16.msra.mxu0 %v585
        %601 = vmatpush.bf16.msra.mxu0 %v584
        %602 = vmatpush.bf16.msra.mxu0 %v583
        %603 = vmatpush.bf16.msra.mxu0 %v582
        %604 = vmatpush.bf16.msra.mxu0 %v581
        %605 = vmatmul.bf16.gmra.mxu0 %v532
        %v606 = vpop.f32.mrf.mxu0
        %v607 = vadd.f32 0.0, %v606
        %v608 = vpop.f32.mrf.mxu0
        %609 = vdwg.mxu0
        %v610 = vadd.f32 %v531, %v607
        %611 = vst [vmem:[#allocation2] sm:$0xff] %v610
        %p612 = scmp.eq.s32.totalorder %s32, 2
        // Predicated region
        $region57: #{tpu_custom_call.1} parent=35 // pred_check
          %p613 = pneg %p612
        $region58: #{tpu_custom_call.1} parent=35 // pred_check_branch
          %615 = sbr.rel (%p613) target = $region60
        $region59: #{tpu_custom_call.1} parent=35 // pred_region
          %v616 = vld [vmem:[#allocation2] sm:$0xff]
          %617 = vst [vmem:[%s347] sm:$0xff] %v616
        $region60: #{tpu_custom_call.1} parent=35 // pred_fallthru
          _
        %s618 = sand.u32 %s151, 1
        %s619 = scalar_lea.sflag [#allocation5], %s618
        %s620 = sand.u32 %s151, 1
        %s621 = smul.addr %s620, 8
        %s622 = scalar_lea.vmem [#allocation11], %s621
        // Predicated region
        $region61: #{tpu_custom_call.1} parent=35 // pred_check
          %p623 = pneg %p161
        $region62: #{tpu_custom_call.1} parent=35 // pred_check_branch
          %625 = sbr.rel (%p623) target = $region64
        $region63: #{tpu_custom_call.1} parent=35 // pred_region
          %627 = vsyncadd %s619, 0
          %s628 = smul.addr %s31, 8
          %s629 = scalar_lea.hbm %s4, %s628
          %s631 = sshll.u32 %s622, 4
          %s632 = int_to_ptr.vmem [resolvable:$true] %s631
          %s633 = sshll.u32 %s629, 4
          %s634 = int_to_ptr.hbm [resolvable:$true] %s633
          %636 = dma.vmem_to_hbm [thread:$0]  %s632, 128, %s634, %s619
        $region64: #{tpu_custom_call.1} parent=35 // pred_fallthru
          _
      $region36: #{tpu_custom_call.1} parent=5 // pred_fallthru
        _
      %p637 = scmp.le.s32.totalorder 2, %s22
      // Predicated region
      $region65: #{tpu_custom_call.1} parent=5 // pred_check
        %p638 = pneg %p637
      $region66: #{tpu_custom_call.1} parent=5 // pred_check_branch
        %640 = sbr.rel (%p638) target = $region68
      $region67: #{tpu_custom_call.1} parent=5 // pred_region
        %s641 = ssub.s32 %s22, 2
        // Predicated region
        $region69: #{tpu_custom_call.1} parent=67 // pred_check
          %p642 = pneg %p167
        $region70: #{tpu_custom_call.1} parent=67 // pred_check_branch
          %644 = sbr.rel (%p642) target = $region72
        $region71: #{tpu_custom_call.1} parent=67 // pred_region
          %s645 = sand.u32 %s152, 1
          %s646 = scalar_lea.sflag [#allocation5], %s645
          %s647 = sand.u32 %s152, 1
          %s648 = smul.addr %s647, 8
          %s649 = scalar_lea.vmem [#allocation11], %s648
          %651 = dma.done %s646, 128
        $region72: #{tpu_custom_call.1} parent=67 // pred_fallthru
          _
      $region68: #{tpu_custom_call.1} parent=5 // pred_fallthru
        _
    $region6: #{tpu_custom_call.1} parent=1 // loop_footer
      %s26 = sadd.s32 1, %s22
    $region7: #{tpu_custom_call.1} parent=1 // loop_footer_branch
      %21 = sbr.rel target = $region3
    $region8: #{tpu_custom_call.1} parent=1 // loop_exit
      _
    %652 = vsyncpa [#allocation4], 1
    %s653 = scalar_lea.sflag [#allocation4], 1
    %654 = vsyncpa %s653, 1
    %655 = vsyncpa [#allocation7], 1
    %s656 = scalar_lea.sflag [#allocation7], 1
    %657 = vsyncpa %s656, 1
    %658 = vsyncpa [#allocation10], 1
    %s659 = scalar_lea.sflag [#allocation10], 1
    %660 = vsyncpa %s659, 1
    %661 = vsyncpa [#allocation5], 1
    %s662 = scalar_lea.sflag [#allocation5], 1
    %663 = vsyncpa %s662, 1

</llo_original>
